<compile_context>
chip_gen: v7x
topology: tpu7x:2x2x1
jax: 0.10.0
libtpu: 0.0.40
codegen_flags: <defaults>
</compile_context>

<pallas_src>
import functools

import jax
import jax.numpy as jnp
from jax.experimental import pallas as pl
from jax.experimental.pallas import tpu as pltpu


def _round_up(v, m):
    return ((v + m - 1) // m) * m


# ---------------- propagation kernel: OUT = A_hat @ XW + b -------------------
# Variant A: XW is fully VMEM-resident (single DMA); slice the k-chunk inside.
def _prop_kernel_resident(a_ref, xw_ref, b_ref, out_ref, *, tk):
    k = pl.program_id(1)

    @pl.when(k == 0)
    def _():
        # Fold the bias into the accumulator init (no epilogue add needed).
        out_ref[...] = jnp.broadcast_to(b_ref[...], out_ref.shape)

    off = pl.multiple_of(k * tk, tk)
    out_ref[...] += jnp.dot(
        a_ref[...], xw_ref[pl.ds(off, tk), :],
        preferred_element_type=jnp.float32)


# Variant B: XW streamed per k-tile (only used when resident XW won't fit).
def _prop_kernel_streamed(a_ref, xw_ref, b_ref, out_ref):
    k = pl.program_id(1)

    @pl.when(k == 0)
    def _():
        out_ref[...] = jnp.broadcast_to(b_ref[...], out_ref.shape)

    out_ref[...] += jnp.dot(
        a_ref[...], xw_ref[...], preferred_element_type=jnp.float32)


def cmap_encoder1(x, edge_index, w_mu, b_mu, w_ls, b_ls):
    """Normalized adjacency (O(E) glue) + one fused/tiled Pallas propagation."""
    n, f_in = x.shape
    f_out = w_mu.shape[1]
    f2 = 2 * f_out
    f_pad = _round_up(f2, 128)          # lane-dense padded output width

    # ---- O(E) glue: A_hat = D^{-1/2} (A + I) D^{-1/2} (scatter-add build) ---
    src = edge_index[0]
    dst = edge_index[1]
    a = jnp.zeros((n, n), jnp.float32).at[dst, src].add(1.0)
    a = a + jnp.eye(n, dtype=jnp.float32)
    deg = a.sum(axis=1)
    dinv = jnp.where(deg > 0.0, jax.lax.rsqrt(deg), 0.0)
    a_hat = dinv[:, None] * a * dinv[None, :]

    # ---- fuse mu / logstd heads: one weight / bias, one feature matmul ------
    w_cat = jnp.pad(
        jnp.concatenate([w_mu, w_ls], axis=1).astype(jnp.float32),
        ((0, 0), (0, f_pad - f2)))                          # [F_in, f_pad]
    b_cat = jnp.pad(
        jnp.concatenate([b_mu, b_ls]).astype(jnp.float32),
        (0, f_pad - f2)).reshape(1, f_pad)                  # [1, f_pad]
    xw = x.astype(jnp.float32) @ w_cat                      # [N, f_pad] (f32)

    # ---- tiling: target tm=512, pad N up to it; grow tk when it divides -----
    n128 = _round_up(n, 128)
    if n128 <= 512:
        tm = tk = n_pad = n128
    else:
        tm = 512
        n_pad = _round_up(n128, tm)
        tk = tm
        for cand in (2048, 1536, 1024):                     # amortize per-step cost
            if n_pad % cand == 0:
                tk = cand
                break

    a_pad = jnp.pad(a_hat, ((0, n_pad - n), (0, n_pad - n))).astype(jnp.bfloat16)
    xw_pad = jnp.pad(xw, ((0, n_pad - n), (0, 0))).astype(jnp.bfloat16)

    # ---- explicit VMEM budget (v7x has 64 MiB physical; v5e default is 16) --
    VMEM_BUDGET = 48 << 20
    base = (2 * tm * tk * 2          # A tiles, bf16, double-buffered
            + 2 * tm * f_pad * 4     # resident f32 output block (x2 headroom)
            + 2 * f_pad * 4)         # bias
    resident_xw_bytes = 2 * n_pad * f_pad * 2   # conservatively count 2 bufs
    xw_resident = (base + resident_xw_bytes) * 5 // 4 <= VMEM_BUDGET

    if xw_resident:
        kernel = functools.partial(_prop_kernel_resident, tk=tk)
        xw_spec = pl.BlockSpec((n_pad, f_pad), lambda i, k: (0, 0))
        xw_traffic = n_pad * f_pad * 2
    else:
        kernel = _prop_kernel_streamed
        xw_spec = pl.BlockSpec((tk, f_pad), lambda i, k: (k, 0))
        xw_traffic = (n_pad // tm) * n_pad * f_pad * 2

    flops = 2 * n_pad * n_pad * f_pad
    bytes_acc = a_pad.size * 2 + xw_traffic + n_pad * f_pad * 4 + b_cat.size * 4

    out = pl.pallas_call(
        kernel,
        out_shape=jax.ShapeDtypeStruct((n_pad, f_pad), jnp.float32),
        grid_spec=pltpu.PrefetchScalarGridSpec(
            num_scalar_prefetch=0,
            grid=(n_pad // tm, n_pad // tk),
            in_specs=[pl.BlockSpec((tm, tk), lambda i, k: (i, k)),
                      xw_spec,
                      pl.BlockSpec((1, f_pad), lambda i, k: (0, 0))],
            out_specs=pl.BlockSpec((tm, f_pad), lambda i, k: (i, 0))),
        compiler_params=pltpu.CompilerParams(
            dimension_semantics=("parallel", "arbitrary"),
            vmem_limit_bytes=VMEM_BUDGET),
        cost_estimate=pl.CostEstimate(
            flops=flops, transcendentals=0, bytes_accessed=bytes_acc),
    )(a_pad, xw_pad, b_cat)

    mu = out[:n, :f_out]
    ls = out[:n, f_out:f2]
    return mu, ls


def _reference(x, edge_index, w_mu, b_mu, w_ls, b_ls):
    n = x.shape[0]
    a = jnp.zeros((n, n), jnp.float32).at[edge_index[1], edge_index[0]].add(1.0)
    a = a + jnp.eye(n, dtype=jnp.float32)
    deg = a.sum(axis=1)
    dinv = jnp.where(deg > 0.0, jax.lax.rsqrt(deg), 0.0)
    a_hat = dinv[:, None] * a * dinv[None, :]
    mu = a_hat @ (x @ w_mu) + b_mu[None, :]
    ls = a_hat @ (x @ w_ls) + b_ls[None, :]
    return mu, ls


if __name__ == "__main__":
    key = jax.random.PRNGKey(0)
    n_nodes, in_size, out_size = 16, 16, 8   # small synthetic graph

    k_x, k_wmu, k_bmu, k_wls, k_bls = jax.random.split(key, 5)
    x = jax.random.normal(k_x, (n_nodes, in_size), dtype=jnp.float32)

    # Deterministic synthetic parameters (not a checkpoint).
    w_mu = jax.random.normal(k_wmu, (in_size, out_size), jnp.float32) * 0.1
    b_mu = jax.random.normal(k_bmu, (out_size,), jnp.float32) * 0.1
    w_ls = jax.random.normal(k_wls, (in_size, out_size), jnp.float32) * 0.1
    b_ls = jax.random.normal(k_bls, (out_size,), jnp.float32) * 0.1

    # Undirected ring graph: edges (i, i+1) in both directions.
    fwd = jnp.stack([jnp.arange(n_nodes), (jnp.arange(n_nodes) + 1) % n_nodes])
    edge_index = jnp.concatenate([fwd, fwd[::-1]], axis=1)   # [2, 2*N]

    mu, ls = cmap_encoder1(x, edge_index, w_mu, b_mu, w_ls, b_ls)
    jax.block_until_ready((mu, ls))

    mu_ref, ls_ref = _reference(x, edge_index, w_mu, b_mu, w_ls, b_ls)
    assert mu.shape == (n_nodes, out_size) and ls.shape == (n_nodes, out_size)
    # bf16 operands / f32 accumulation: expect ~1e-2 absolute agreement.
    assert jnp.allclose(mu, mu_ref, atol=2e-2), float(jnp.abs(mu - mu_ref).max())
    assert jnp.allclose(ls, ls_ref, atol=2e-2), float(jnp.abs(ls - ls_ref).max())

    print("KERNEL_OK")
</pallas_src>

<mosaic_0001>
module attributes {stable_mosaic.version = 11 : i64} {
  func.func @_prop_kernel_resident(%arg0: i32, %arg1: i32, %arg2: memref<128x128xbf16, #tpu.memory_space<vmem>>, %arg3: memref<128x128xbf16, #tpu.memory_space<vmem>>, %arg4: memref<1x128xf32, #tpu.memory_space<vmem>>, %arg5: memref<128x128xf32, #tpu.memory_space<vmem>>) attributes {dimension_semantics = [#tpu.dimension_semantics<parallel>, #tpu.dimension_semantics<arbitrary>], iteration_bounds = array<i64: 1, 1>, scalar_prefetch = 0 : i64, scratch_operands = 0 : i64, tpu.core_type = #tpu.core_type<tc>, window_params = [{transform_indices = @transform_0, window_bounds = array<i64: 128, 128>}, {pipeline_mode = #tpu.pipeline_mode<synchronous>, transform_indices = @transform_1, window_bounds = array<i64: 128, 128>}, {pipeline_mode = #tpu.pipeline_mode<synchronous>, transform_indices = @transform_2, window_bounds = array<i64: 1, 128>}, {transform_indices = @transform_3, window_bounds = array<i64: 128, 128>}]} {
    %c0_i32 = arith.constant 0 : i32
    %0 = arith.cmpi eq, %arg1, %c0_i32 : i32
    %1 = arith.extui %0 : i1 to i32
    %c0_i32_0 = arith.constant 0 : i32
    %2 = arith.cmpi ne, %1, %c0_i32_0 : i32
    scf.if %2 {
      %c0_7 = arith.constant 0 : index
      %c0_8 = arith.constant 0 : index
      %12 = vector.load %arg4[%c0_7, %c0_8] : memref<1x128xf32, #tpu.memory_space<vmem>>, vector<1x128xf32>
      %13 = vector.shape_cast %12 : vector<1x128xf32> to vector<1x128xf32>
      %14 = vector.broadcast %13 : vector<1x128xf32> to vector<128x128xf32>
      %c0_9 = arith.constant 0 : index
      %c0_10 = arith.constant 0 : index
      %15 = vector.load %arg5[%c0_9, %c0_10] : memref<128x128xf32, #tpu.memory_space<vmem>>, vector<128x128xf32>
      tpu.vector_store %arg5[%c0_9, %c0_10], %14 {strides = array<i32>} : memref<128x128xf32, #tpu.memory_space<vmem>>, vector<128x128xf32>,
    } else {
    }
    %c128_i32 = arith.constant 128 : i32
    %3 = arith.muli %arg1, %c128_i32 : i32
    %4 = tpu.assume_multiple %3, 128 : i32
    %c0 = arith.constant 0 : index
    %c0_1 = arith.constant 0 : index
    %5 = vector.load %arg5[%c0, %c0_1] : memref<128x128xf32, #tpu.memory_space<vmem>>, vector<128x128xf32>
    %c0_2 = arith.constant 0 : index
    %c0_3 = arith.constant 0 : index
    %6 = vector.load %arg2[%c0_2, %c0_3] : memref<128x128xbf16, #tpu.memory_space<vmem>>, vector<128x128xbf16>
    %7 = arith.index_cast %4 : i32 to index
    %c0_4 = arith.constant 0 : index
    %8 = vector.load %arg3[%7, %c0_4] : memref<128x128xbf16, #tpu.memory_space<vmem>>, vector<128x128xbf16>
    %cst = arith.constant dense<0.000000e+00> : vector<128x128xf32>
    %9 = tpu.matmul %6, %8, %cst {dimension_numbers = #tpu.dot_dimension_numbers<[1], [0], [0], [1], [0, 0, 1, 1], [], []>} : vector<128x128xbf16>, vector<128x128xbf16>, vector<128x128xf32> -> vector<128x128xf32>
    %10 = arith.addf %5, %9 : vector<128x128xf32>
    %c0_5 = arith.constant 0 : index
    %c0_6 = arith.constant 0 : index
    %11 = vector.load %arg5[%c0_5, %c0_6] : memref<128x128xf32, #tpu.memory_space<vmem>>, vector<128x128xf32>
    tpu.vector_store %arg5[%c0_5, %c0_6], %10 {strides = array<i32>} : memref<128x128xf32, #tpu.memory_space<vmem>>, vector<128x128xf32>,
    return
  }
  func.func @transform_0(%arg0: i32, %arg1: i32) -> (i32, i32) {
    %c0_i32 = arith.constant 0 : i32
    return %arg0, %arg1 : i32, i32
  }
  func.func @transform_1(%arg0: i32, %arg1: i32) -> (i32, i32) {
    %c0_i32 = arith.constant 0 : i32
    %c0_i32_0 = arith.constant 0 : i32
    %c0_i32_1 = arith.constant 0 : i32
    return %c0_i32, %c0_i32_0 : i32, i32
  }
  func.func @transform_2(%arg0: i32, %arg1: i32) -> (i32, i32) {
    %c0_i32 = arith.constant 0 : i32
    %c0_i32_0 = arith.constant 0 : i32
    %c0_i32_1 = arith.constant 0 : i32
    return %c0_i32, %c0_i32_0 : i32, i32
  }
  func.func @transform_3(%arg0: i32, %arg1: i32) -> (i32, i32) {
    %c0_i32 = arith.constant 0 : i32
    %c0_i32_0 = arith.constant 0 : i32
    return %arg0, %c0_i32 : i32, i32
  }
}

</mosaic_0001>

<llo_original>
// kernel: tpu_custom_call.1
$region0: #{tpu_custom_call.1}
  #allocation0 [shape = 'u32[]', space=smem, size = 0x4, offset = 0x4, fixed_abs, tag = 'smem constant byte address 0x4 - core index']
  #allocation1 [shape = 'u32[144,128]{1,0:T(1,128)}', space=vmem, size = 0x12000, scoped, tag = 'internal scratch']
  %s0 = inlined_call_operand.hbm [shape: bf16[128,128], index: 0, kind: input, shape index: {}]
  %s1 = inlined_call_operand.hbm [shape: bf16[128,128], index: 1, kind: input, shape index: {}]
  %s2 = inlined_call_operand.vmem [shape: f32[1,128], index: 2, kind: input, shape index: {}]
  %s3 = inlined_call_operand.hbm [shape: f32[128,128], index: 3, kind: output, shape index: {}]
  %s4 = sld [smem:[#allocation0]]
  $region34: #{tpu_custom_call.1} parent=0
    _
  %s6 = ssub.s32 1, %s4
  %s7 = scalar_select 0, %s6, %s4
  $region1: #{tpu_custom_call.1} parent=0
    #allocation2 [shape = 'u8[32768]{0}', space=vmem, size = 0x8000, scoped, tag = 'input window, operand 0, single buffered']
    #allocation3 [shape = 's32[1]{0}', space=sflag, size = 0x4, scoped, tag = 'scoped memory for tpu_custom_call.1']
    #allocation4 [shape = 's32[1]{0}', space=sflag, size = 0x4, scoped, tag = 'scoped memory for tpu_custom_call.1']
    #allocation5 [shape = 'u8[32768]{0}', space=vmem, size = 0x8000, scoped, tag = 'input window, operand 1, single buffered']
    #allocation6 [shape = 's32[1]{0}', space=sflag, size = 0x4, scoped, tag = 'scoped memory for tpu_custom_call.1']
    #allocation7 [shape = 'u8[65536]{0}', space=vmem, size = 0x10000, scoped, tag = 'output window, operand 0, single buffered']
    %8 = vsyncpa [#allocation3], 0
    %9 = vsyncpa [#allocation6], 0
    %10 = vsyncpa [#allocation4], 0
    // Predicated region
    $region2: #{tpu_custom_call.1} parent=1 // pred_check
      _
    $region3: #{tpu_custom_call.1} parent=1 // pred_check_branch
      %12 = sbr.rel (0) target = $region5
    $region4: #{tpu_custom_call.1} parent=1 // pred_region
      %s14 = ssub.s32 1024, 1024
      %15 = vsyncadd [#allocation3], %s14
      %s16 = sshll.u32 [#allocation2], 4
      %s17 = int_to_ptr.vmem [resolvable:$true] %s16
      %22 = dma.hbm_to_vmem [thread:$0]  %s0, 1024, %s17, [#allocation3], 64, 64, 4
    $region5: #{tpu_custom_call.1} parent=1 // pred_fallthru
      _
    // Predicated region
    $region6: #{tpu_custom_call.1} parent=1 // pred_check
      _
    $region7: #{tpu_custom_call.1} parent=1 // pred_check_branch
      %24 = sbr.rel (0) target = $region9
    $region8: #{tpu_custom_call.1} parent=1 // pred_region
      %s26 = ssub.s32 1024, 1024
      %27 = vsyncadd [#allocation6], %s26
      %s28 = sshll.u32 [#allocation5], 4
      %s29 = int_to_ptr.vmem [resolvable:$true] %s28
      %34 = dma.hbm_to_vmem [thread:$0]  %s1, 1024, %s29, [#allocation6], 64, 64, 4
    $region9: #{tpu_custom_call.1} parent=1 // pred_fallthru
      _
    // Predicated region
    $region10: #{tpu_custom_call.1} parent=1 // pred_check
      _
    $region11: #{tpu_custom_call.1} parent=1 // pred_check_branch
      %36 = sbr.rel (0) target = $region13
    $region12: #{tpu_custom_call.1} parent=1 // pred_region
      _
    $region13: #{tpu_custom_call.1} parent=1 // pred_fallthru
      _
    // Predicated region
    $region14: #{tpu_custom_call.1} parent=1 // pred_check
      _
    $region15: #{tpu_custom_call.1} parent=1 // pred_check_branch
      %38 = sbr.rel (0) target = $region17
    $region16: #{tpu_custom_call.1} parent=1 // pred_region
      %39 = dma.done [#allocation3], 1024
    $region17: #{tpu_custom_call.1} parent=1 // pred_fallthru
      _
    // Predicated region
    $region18: #{tpu_custom_call.1} parent=1 // pred_check
      _
    $region19: #{tpu_custom_call.1} parent=1 // pred_check_branch
      %41 = sbr.rel (0) target = $region21
    $region20: #{tpu_custom_call.1} parent=1 // pred_region
      %42 = dma.done [#allocation6], 1024
    $region21: #{tpu_custom_call.1} parent=1 // pred_fallthru
      _
    %p44 = scmp.eq.s32.totalorder 0, 0
    // Predicated region
    $region22: #{tpu_custom_call.1} parent=1 // pred_check
      %p45 = pneg %p44
    $region23: #{tpu_custom_call.1} parent=1 // pred_check_branch
      %47 = sbr.rel (%p45) target = $region25
    $region24: #{tpu_custom_call.1} parent=1 // pred_region
      %v48 = vld [vmem:[%s2] sm:$0x1]
      %v50 = vlaneseq
      %v51 = vshrl.u32 %v50, 7
      %v52 = vsub.s32 0, %v51
      %v53 = vrot.slane %v48, %v52
      %55 = vst [vmem:[#allocation7] sm:$0xff] %v53
      %56 = vst [vmem:[#allocation7 + $0x8] sm:$0xff] %v53
      %57 = vst [vmem:[#allocation7 + $0x10] sm:$0xff] %v53
      %58 = vst [vmem:[#allocation7 + $0x18] sm:$0xff] %v53
      %59 = vst [vmem:[#allocation7 + $0x20] sm:$0xff] %v53
      %60 = vst [vmem:[#allocation7 + $0x28] sm:$0xff] %v53
      %61 = vst [vmem:[#allocation7 + $0x30] sm:$0xff] %v53
      %62 = vst [vmem:[#allocation7 + $0x38] sm:$0xff] %v53
      %63 = vst [vmem:[#allocation7 + $0x40] sm:$0xff] %v53
      %64 = vst [vmem:[#allocation7 + $0x48] sm:$0xff] %v53
      %65 = vst [vmem:[#allocation7 + $0x50] sm:$0xff] %v53
      %66 = vst [vmem:[#allocation7 + $0x58] sm:$0xff] %v53
      %67 = vst [vmem:[#allocation7 + $0x60] sm:$0xff] %v53
      %68 = vst [vmem:[#allocation7 + $0x68] sm:$0xff] %v53
      %69 = vst [vmem:[#allocation7 + $0x70] sm:$0xff] %v53
      %70 = vst [vmem:[#allocation7 + $0x78] sm:$0xff] %v53
    $region25: #{tpu_custom_call.1} parent=1 // pred_fallthru
      _
    %s71 = smul.u32 0, 128
    %v72 = vld [vmem:[#allocation7] sm:$0xff]
    %v73 = vld [vmem:[#allocation7 + $0x8] sm:$0xff]
    %v74 = vld [vmem:[#allocation7 + $0x10] sm:$0xff]
    %v75 = vld [vmem:[#allocation7 + $0x18] sm:$0xff]
    %v76 = vld [vmem:[#allocation7 + $0x20] sm:$0xff]
    %v77 = vld [vmem:[#allocation7 + $0x28] sm:$0xff]
    %v78 = vld [vmem:[#allocation7 + $0x30] sm:$0xff]
    %v79 = vld [vmem:[#allocation7 + $0x38] sm:$0xff]
    %v80 = vld [vmem:[#allocation7 + $0x40] sm:$0xff]
    %v81 = vld [vmem:[#allocation7 + $0x48] sm:$0xff]
    %v82 = vld [vmem:[#allocation7 + $0x50] sm:$0xff]
    %v83 = vld [vmem:[#allocation7 + $0x58] sm:$0xff]
    %v84 = vld [vmem:[#allocation7 + $0x60] sm:$0xff]
    %v85 = vld [vmem:[#allocation7 + $0x68] sm:$0xff]
    %v86 = vld [vmem:[#allocation7 + $0x70] sm:$0xff]
    %v87 = vld [vmem:[#allocation7 + $0x78] sm:$0xff]
    %v88 = vld [vmem:[#allocation2] sm:$0xf]
    %v89 = vld [vmem:[#allocation2 + $0x4] sm:$0xf]
    %v90 = vld [vmem:[#allocation2 + $0x8] sm:$0xf]
    %v91 = vld [vmem:[#allocation2 + $0xc] sm:$0xf]
    %v92 = vld [vmem:[#allocation2 + $0x10] sm:$0xf]
    %v93 = vld [vmem:[#allocation2 + $0x14] sm:$0xf]
    %v94 = vld [vmem:[#allocation2 + $0x18] sm:$0xf]
    %v95 = vld [vmem:[#allocation2 + $0x1c] sm:$0xf]
    %v96 = vld [vmem:[#allocation2 + $0x20] sm:$0xf]
    %v97 = vld [vmem:[#allocation2 + $0x24] sm:$0xf]
    %v98 = vld [vmem:[#allocation2 + $0x28] sm:$0xf]
    %v99 = vld [vmem:[#allocation2 + $0x2c] sm:$0xf]
    %v100 = vld [vmem:[#allocation2 + $0x30] sm:$0xf]
    %v101 = vld [vmem:[#allocation2 + $0x34] sm:$0xf]
    %v102 = vld [vmem:[#allocation2 + $0x38] sm:$0xf]
    %v103 = vld [vmem:[#allocation2 + $0x3c] sm:$0xf]
    %s104 = sshra.s32 %s71, 3
    %s105 = sand.u32 %s71, 7
    %s106 = smul.addr %s104, 4
    %s107 = scalar_lea.vmem [#allocation5], %s106
    %v108 = vld [vmem:[%s107] sm:$0xf]
    %v109 = vld [vmem:[%s107 + $0x4] sm:$0xf]
    %v110 = vld [vmem:[%s107 + $0x8] sm:$0xf]
    %v111 = vld [vmem:[%s107 + $0xc] sm:$0xf]
    %v112 = vld [vmem:[%s107 + $0x10] sm:$0xf]
    %v113 = vld [vmem:[%s107 + $0x14] sm:$0xf]
    %v114 = vld [vmem:[%s107 + $0x18] sm:$0xf]
    %v115 = vld [vmem:[%s107 + $0x1c] sm:$0xf]
    %v116 = vld [vmem:[%s107 + $0x20] sm:$0xf]
    %v117 = vld [vmem:[%s107 + $0x24] sm:$0xf]
    %v118 = vld [vmem:[%s107 + $0x28] sm:$0xf]
    %v119 = vld [vmem:[%s107 + $0x2c] sm:$0xf]
    %v120 = vld [vmem:[%s107 + $0x30] sm:$0xf]
    %v121 = vld [vmem:[%s107 + $0x34] sm:$0xf]
    %v122 = vld [vmem:[%s107 + $0x38] sm:$0xf]
    %v123 = vld [vmem:[%s107 + $0x3c] sm:$0xf]
    %v140 = vunpack.c.l.b16 %v88
    %v141 = vunpack.c.l.b16 %v89
    %v142 = vunpack.c.l.b16 %v90
    %v143 = vunpack.c.l.b16 %v91
    %v144 = vunpack.c.l.b16 %v92
    %v145 = vunpack.c.l.b16 %v93
    %v146 = vunpack.c.l.b16 %v94
    %v147 = vunpack.c.l.b16 %v95
    %v148 = vunpack.c.l.b16 %v96
    %v149 = vunpack.c.l.b16 %v97
    %v150 = vunpack.c.l.b16 %v98
    %v151 = vunpack.c.l.b16 %v99
    %v152 = vunpack.c.l.b16 %v100
    %v153 = vunpack.c.l.b16 %v101
    %v154 = vunpack.c.l.b16 %v102
    %v155 = vunpack.c.l.b16 %v103
    %v156 = vpack.c.b16 %v141, %v140
    %v157 = vpack.c.b16 %v143, %v142
    %v158 = vpack.c.b16 %v145, %v144
    %v159 = vpack.c.b16 %v147, %v146
    %v160 = vpack.c.b16 %v149, %v148
    %v161 = vpack.c.b16 %v151, %v150
    %v162 = vpack.c.b16 %v153, %v152
    %v163 = vpack.c.b16 %v155, %v154
    %v188 = vunpack.c.l.b16 %v108
    %v189 = vunpack.c.l.b16 %v109
    %v190 = vunpack.c.l.b16 %v110
    %v191 = vunpack.c.l.b16 %v111
    %v192 = vunpack.c.l.b16 %v112
    %v193 = vunpack.c.l.b16 %v113
    %v194 = vunpack.c.l.b16 %v114
    %v195 = vunpack.c.l.b16 %v115
    %v196 = vunpack.c.l.b16 %v116
    %v197 = vunpack.c.l.b16 %v117
    %v198 = vunpack.c.l.b16 %v118
    %v199 = vunpack.c.l.b16 %v119
    %v200 = vunpack.c.l.b16 %v120
    %v201 = vunpack.c.l.b16 %v121
    %v202 = vunpack.c.l.b16 %v122
    %v203 = vunpack.c.l.b16 %v123
    %v204 = vpack.c.b16 %v189, %v188
    %v205 = vpack.c.b16 %v191, %v190
    %v206 = vpack.c.b16 %v193, %v192
    %v207 = vpack.c.b16 %v195, %v194
    %v208 = vpack.c.b16 %v197, %v196
    %v209 = vpack.c.b16 %v199, %v198
    %v210 = vpack.c.b16 %v201, %v200
    %v211 = vpack.c.b16 %v203, %v202
    %220 = vmatprep.subr.bf16.mxu0 0
    %221 = vmatpush1.bf16.msra.mxu0 %v204
    %222 = vmatprep.subr.bf16.mxu0 0
    %223 = vmatpush1.bf16.msra.mxu0 %v205
    %224 = vmatprep.subr.bf16.mxu0 0
    %225 = vmatpush1.bf16.msra.mxu0 %v206
    %226 = vmatprep.subr.bf16.mxu0 0
    %227 = vmatpush1.bf16.msra.mxu0 %v207
    %228 = vmatprep.subr.bf16.mxu0 0
    %229 = vmatpush1.bf16.msra.mxu0 %v208
    %230 = vmatprep.subr.bf16.mxu0 0
    %231 = vmatpush1.bf16.msra.mxu0 %v209
    %232 = vmatprep.subr.bf16.mxu0 0
    %233 = vmatpush1.bf16.msra.mxu0 %v210
    %234 = vmatprep.subr.bf16.mxu0 0
    %235 = vmatpush1.bf16.msra.mxu0 %v211
    %236 = vmatprep.subr.bf16.mxu0 0
    %237 = vmatpush1.bf16.msra.mxu0 0
    %238 = vmatprep.subr.bf16.mxu0 0
    %239 = vmatpush1.bf16.msra.mxu0 0
    %240 = vmatprep.subr.bf16.mxu0 0
    %241 = vmatpush1.bf16.msra.mxu0 0
    %242 = vmatprep.subr.bf16.mxu0 0
    %243 = vmatpush1.bf16.msra.mxu0 0
    %244 = vmatprep.subr.bf16.mxu0 0
    %245 = vmatpush1.bf16.msra.mxu0 0
    %246 = vmatprep.subr.bf16.mxu0 0
    %247 = vmatpush1.bf16.msra.mxu0 0
    %248 = vmatprep.subr.bf16.mxu0 0
    %249 = vmatpush1.bf16.msra.mxu0 0
    %250 = vmatprep.subr.bf16.mxu0 0
    %251 = vmatpush1.bf16.msra.mxu0 0
    %252 = vmatprep.mubr.bf16.mxu0 0
    %253 = vmatmul.mubr.bf16.gmra.mrb[0].mxu0 %v156
    %v254 = vpop.f32.mrb[0].mxu0
    %v255 = vadd.f32 0.0, %v254
    %v256 = vpop.f32.mrb[0].mxu0
    %v257 = vpop.f32.mrb[0].mxu0
    %v258 = vadd.f32 0.0, %v257
    %v259 = vpop.f32.mrb[0].mxu0
    %260 = vmatprep.mubr.bf16.mxu0 0
    %261 = vmatmul.mubr.bf16.gmra.mrb[0].mxu0 %v157
    %v262 = vpop.f32.mrb[0].mxu0
    %v263 = vadd.f32 0.0, %v262
    %v264 = vpop.f32.mrb[0].mxu0
    %v265 = vpop.f32.mrb[0].mxu0
    %v266 = vadd.f32 0.0, %v265
    %v267 = vpop.f32.mrb[0].mxu0
    %268 = vmatprep.mubr.bf16.mxu0 0
    %269 = vmatmul.mubr.bf16.gmra.mrb[0].mxu0 %v158
    %v270 = vpop.f32.mrb[0].mxu0
    %v271 = vadd.f32 0.0, %v270
    %v272 = vpop.f32.mrb[0].mxu0
    %v273 = vpop.f32.mrb[0].mxu0
    %v274 = vadd.f32 0.0, %v273
    %v275 = vpop.f32.mrb[0].mxu0
    %276 = vmatprep.mubr.bf16.mxu0 0
    %277 = vmatmul.mubr.bf16.gmra.mrb[0].mxu0 %v159
    %v278 = vpop.f32.mrb[0].mxu0
    %v279 = vadd.f32 0.0, %v278
    %v280 = vpop.f32.mrb[0].mxu0
    %v281 = vpop.f32.mrb[0].mxu0
    %v282 = vadd.f32 0.0, %v281
    %v283 = vpop.f32.mrb[0].mxu0
    %284 = vmatprep.mubr.bf16.mxu0 0
    %285 = vmatmul.mubr.bf16.gmra.mrb[0].mxu0 %v160
    %v286 = vpop.f32.mrb[0].mxu0
    %v287 = vadd.f32 0.0, %v286
    %v288 = vpop.f32.mrb[0].mxu0
    %v289 = vpop.f32.mrb[0].mxu0
    %v290 = vadd.f32 0.0, %v289
    %v291 = vpop.f32.mrb[0].mxu0
    %292 = vmatprep.mubr.bf16.mxu0 0
    %293 = vmatmul.mubr.bf16.gmra.mrb[0].mxu0 %v161
    %v294 = vpop.f32.mrb[0].mxu0
    %v295 = vadd.f32 0.0, %v294
    %v296 = vpop.f32.mrb[0].mxu0
    %v297 = vpop.f32.mrb[0].mxu0
    %v298 = vadd.f32 0.0, %v297
    %v299 = vpop.f32.mrb[0].mxu0
    %300 = vmatprep.mubr.bf16.mxu0 0
    %301 = vmatmul.mubr.bf16.gmra.mrb[0].mxu0 %v162
    %v302 = vpop.f32.mrb[0].mxu0
    %v303 = vadd.f32 0.0, %v302
    %v304 = vpop.f32.mrb[0].mxu0
    %v305 = vpop.f32.mrb[0].mxu0
    %v306 = vadd.f32 0.0, %v305
    %v307 = vpop.f32.mrb[0].mxu0
    %308 = vmatprep.mubr.bf16.mxu0 0
    %309 = vmatmul.mubr.bf16.gmra.mrb[0].mxu0 %v163
    %v310 = vpop.f32.mrb[0].mxu0
    %v311 = vadd.f32 0.0, %v310
    %v312 = vpop.f32.mrb[0].mxu0
    %v313 = vpop.f32.mrb[0].mxu0
    %v314 = vadd.f32 0.0, %v313
    %v315 = vpop.f32.mrb[0].mxu0
    %316 = vdwg.mxu0
    %v317 = vadd.f32 %v72, %v255
    %v318 = vadd.f32 %v73, %v258
    %v319 = vadd.f32 %v74, %v263
    %v320 = vadd.f32 %v75, %v266
    %v321 = vadd.f32 %v76, %v271
    %v322 = vadd.f32 %v77, %v274
    %v323 = vadd.f32 %v78, %v279
    %v324 = vadd.f32 %v79, %v282
    %v325 = vadd.f32 %v80, %v287
    %v326 = vadd.f32 %v81, %v290
    %v327 = vadd.f32 %v82, %v295
    %v328 = vadd.f32 %v83, %v298
    %v329 = vadd.f32 %v84, %v303
    %v330 = vadd.f32 %v85, %v306
    %v331 = vadd.f32 %v86, %v311
    %v332 = vadd.f32 %v87, %v314
    %333 = vst [vmem:[#allocation7] sm:$0xff] %v317
    %334 = vst [vmem:[#allocation7 + $0x8] sm:$0xff] %v318
    %335 = vst [vmem:[#allocation7 + $0x10] sm:$0xff] %v319
    %336 = vst [vmem:[#allocation7 + $0x18] sm:$0xff] %v320
    %337 = vst [vmem:[#allocation7 + $0x20] sm:$0xff] %v321
    %338 = vst [vmem:[#allocation7 + $0x28] sm:$0xff] %v322
    %339 = vst [vmem:[#allocation7 + $0x30] sm:$0xff] %v323
    %340 = vst [vmem:[#allocation7 + $0x38] sm:$0xff] %v324
    %341 = vst [vmem:[#allocation7 + $0x40] sm:$0xff] %v325
    %342 = vst [vmem:[#allocation7 + $0x48] sm:$0xff] %v326
    %343 = vst [vmem:[#allocation7 + $0x50] sm:$0xff] %v327
    %344 = vst [vmem:[#allocation7 + $0x58] sm:$0xff] %v328
    %345 = vst [vmem:[#allocation7 + $0x60] sm:$0xff] %v329
    %346 = vst [vmem:[#allocation7 + $0x68] sm:$0xff] %v330
    %347 = vst [vmem:[#allocation7 + $0x70] sm:$0xff] %v331
    %348 = vst [vmem:[#allocation7 + $0x78] sm:$0xff] %v332
    // Predicated region
    $region26: #{tpu_custom_call.1} parent=1 // pred_check
      _
    $region27: #{tpu_custom_call.1} parent=1 // pred_check_branch
      %350 = sbr.rel (0) target = $region29
    $region28: #{tpu_custom_call.1} parent=1 // pred_region
      %s352 = ssub.s32 2048, 2048
      %353 = vsyncadd [#allocation4], %s352
      %s354 = sshll.u32 [#allocation7], 4
      %s355 = int_to_ptr.vmem [resolvable:$true] %s354
      %360 = dma.vmem_to_hbm [thread:$0]  %s355, 2048, %s3, [#allocation4], 128, 128, 8
    $region29: #{tpu_custom_call.1} parent=1 // pred_fallthru
      _
    // Predicated region
    $region30: #{tpu_custom_call.1} parent=1 // pred_check
      _
    $region31: #{tpu_custom_call.1} parent=1 // pred_check_branch
      %362 = sbr.rel (0) target = $region33
    $region32: #{tpu_custom_call.1} parent=1 // pred_region
      %363 = dma.done [#allocation4], 2048
    $region33: #{tpu_custom_call.1} parent=1 // pred_fallthru
      _
    %364 = vsyncpa [#allocation3], 1
    %365 = vsyncpa [#allocation6], 1
    %366 = vsyncpa [#allocation4], 1

</llo_original>
